<compile_context>
chip_gen: v5e
topology: v5e:2x2
jax: 0.10.0
libtpu: 0.0.40
codegen_flags: <defaults>
</compile_context>

<pallas_src>
import functools

import jax
import jax.numpy as jnp
from jax.experimental import pallas as pl
from jax.experimental.pallas import tpu as pltpu


def _pick_h_tile(h_out, row_bytes, target_rows=256, budget_bytes=8 << 20):
    """Output-row tile: fill the MXU M dimension (target 256) within a VMEM budget.

    Must be either the full H_out or a multiple of 8 that divides H_out
    (second-minor dim constraint)."""
    cap = min(target_rows, max(8, budget_bytes // max(int(row_bytes), 1)))
    if h_out <= cap:
        return h_out
    th = (cap // 8) * 8
    while th >= 8:
        if h_out % th == 0:
            return th
        th -= 8
    return h_out


def _pick_pw_tile(k_rows, n_cols, budget_bytes=4 << 20):
    """Lane tile of the pointwise matrix B (bf16, double-buffered slab <= budget)."""
    slab = lambda tn: 2 * k_rows * tn * 2      # 2 buffers * K * TN * bf16
    if slab(n_cols) <= budget_bytes:
        return n_cols
    best = None
    tn = 128
    while tn < n_cols:                          # largest 128-multiple divisor that fits
        if n_cols % tn == 0 and slab(tn) <= budget_bytes:
            best = tn
        tn += 128
    if best is not None:
        return best
    tn = 128
    while tn < n_cols:                          # else smallest lane-aligned divisor
        if n_cols % tn == 0:
            return tn
        tn += 128
    return n_cols


def _make_kernel(KH, KW, C_in, W_conv, TH, stride, dilation):
    span = (TH - 1) * stride + 1                 # stride-1 input rows covered
    in_span = span + dilation * (KH - 1)         # input rows needed (with halo)
    wc_conv = W_conv * C_in

    def kernel(x_ref, dw_ref, b_ref, o_ref, acc_ref):
        # x_ref  : (H_pad, W_pad*C_in)     folded image, resident per batch element
        # dw_ref : (KH*KW, W_conv*C_in)    depthwise taps tiled along W (lane-dense)
        # b_ref  : (W_conv*C_in, TN)       pointwise (+W-stride) slab, bf16
        # o_ref  : (TH, TN)                lane-dense output tile
        # acc_ref: (TH, W_conv*C_in) bf16  depthwise result, reused across B slabs
        ht = pl.program_id(1)

        @pl.when(pl.program_id(2) == 0)
        def _depthwise():
            h_base = pl.multiple_of(ht * (TH * stride), TH * stride)
            # One dynamic sublane read per (n, h-tile); everything below is
            # static in-register slicing.
            xin = x_ref[pl.ds(h_base, in_span), :].astype(jnp.float32)
            dw = dw_ref[...].astype(jnp.float32)

            # Hoist the KW lane shifts out of the kh loop (reused across kh).
            shifted = [
                xin[:, kw * dilation * C_in:kw * dilation * C_in + wc_conv]
                for kw in range(KW)
            ]

            acc = jnp.zeros((TH, wc_conv), jnp.float32)
            for kh in range(KH):
                r0 = kh * dilation
                for kw in range(KW):
                    rows = shifted[kw][r0:r0 + span, :]
                    if stride > 1:               # MAC only the kept output rows
                        rows = rows[::stride]
                    acc = acc + rows * dw[kh * KW + kw, :]

            # Round once to bf16 so the MXU sees native bf16 operands.
            acc_ref[...] = acc.astype(acc_ref.dtype)

        # Pointwise 1x1 conv (+ W-stride decimation) as a bf16 x bf16 -> f32 MXU
        # matmul against the current B slab.
        out = jnp.dot(acc_ref[...], b_ref[...], preferred_element_type=jnp.float32)
        o_ref[...] = out.astype(o_ref.dtype)

    return kernel


def separable_conv2d(x_nchw, dw_weight, pw_weight, *, stride=1, padding=0,
                     dilation=1, h_tile=None, pw_tile=None):
    """Forward pass of SeparableConv2d (bias=False).

    x_nchw:    (N, C_in, H, W)           -- PyTorch NCHW input
    dw_weight: (C_in, 1, KH, KW)         -- nn.Conv2d(groups=C_in) weight
    pw_weight: (C_out, C_in, 1, 1)       -- nn.Conv2d(1x1) weight
    returns:   (N, C_out, H_out, W_out)  -- NCHW output
    """
    N, C_in, H, W = x_nchw.shape
    KH, KW = int(dw_weight.shape[2]), int(dw_weight.shape[3])
    C_out = int(pw_weight.shape[0])
    itemsize = jnp.dtype(x_nchw.dtype).itemsize

    H_pad, W_pad = H + 2 * padding, W + 2 * padding
    H_out = (H_pad - dilation * (KH - 1) - 1) // stride + 1
    W_out = (W_pad - dilation * (KW - 1) - 1) // stride + 1
    W_conv = W_pad - dilation * (KW - 1)          # stride-1 positions along W
    wc_conv = W_conv * C_in
    out_lanes = W_out * C_out
    assert H_out >= 1 and W_out >= 1

    # NCHW -> NHWC (PyTorch boundary), spatial zero-pad, fold W*C into lanes.
    # TODO(synk): fuse these HBM passes into the kernel (NHWC boundary + in-kernel pad).
    x = jnp.transpose(x_nchw, (0, 2, 3, 1))
    if padding:
        x = jnp.pad(x, ((0, 0), (padding, padding), (padding, padding), (0, 0)))
    x_folded = x.reshape(N, H_pad, W_pad * C_in)

    # Depthwise taps tiled across the folded W axis:
    # dw_folded[kh*KW+kw, wc*C_in+ci] = dw[kh, kw, ci]
    dw = jnp.transpose(dw_weight[:, 0, :, :], (1, 2, 0))            # (KH,KW,C_in)
    dw_folded = jnp.tile(dw.reshape(KH * KW, 1, C_in),
                         (1, W_conv, 1)).reshape(KH * KW, wc_conv)

    # Pointwise 1x1 conv (+ W-stride decimation) as one block-sparse matrix,
    # built in bf16 so the MXU runs native bf16 x bf16 with f32 accumulation:
    # B[wc*C_in+ci, wo*C_out+co] = [wc == wo*stride] * pw[ci, co]
    pw = jnp.transpose(pw_weight[:, :, 0, 0], (1, 0)).astype(jnp.bfloat16)
    sel = (jnp.arange(W_conv)[:, None] == stride * jnp.arange(W_out)[None, :])
    bmat = (sel.astype(jnp.bfloat16)[:, None, :, None]
            * pw[None, :, None, :]).reshape(wc_conv, out_lanes)

    # Tile sizes: fill the MXU M dimension; keep only a slab of B resident.
    TH = _pick_h_tile(H_out, out_lanes * itemsize) if h_tile is None else int(h_tile)
    assert TH == H_out or (TH % 8 == 0 and H_out % TH == 0), (TH, H_out)
    TN = _pick_pw_tile(wc_conv, out_lanes) if pw_tile is None else int(pw_tile)
    assert TN == out_lanes or (TN % 128 == 0 and out_lanes % TN == 0), (TN, out_lanes)
    n_h, n_j = H_out // TH, out_lanes // TN

    kernel = _make_kernel(KH, KW, C_in, W_conv, TH, stride, dilation)

    # Advisory cost + a VMEM limit sized from the actual resident blocks.
    flops = 2 * N * H_out * wc_conv * (KH * KW + out_lanes)
    bytes_accessed = (N * H_pad * W_pad * C_in * itemsize     # image
                      + N * H_out * out_lanes * itemsize      # output
                      + bmat.size * 2                          # B (bf16)
                      + dw_folded.size * itemsize)             # taps
    vmem_need = (2 * H_pad * W_pad * C_in * itemsize           # image (2 buffers)
                 + 2 * KH * KW * wc_conv * itemsize            # taps
                 + 2 * wc_conv * TN * 2                        # B slab (bf16)
                 + 2 * TH * TN * itemsize                      # output tile
                 + TH * wc_conv * 2)                           # acc scratch (bf16)
    vmem_limit = int(min(96 << 20, max(32 << 20, 2 * vmem_need)))

    out_folded = pl.pallas_call(
        kernel,
        out_shape=jax.ShapeDtypeStruct((N, H_out, out_lanes), x_nchw.dtype),
        grid_spec=pltpu.PrefetchScalarGridSpec(
            num_scalar_prefetch=0,
            grid=(N, n_h, n_j),
            in_specs=[
                # Full folded image per batch element; block index is constant
                # along the h-tile / B-slab axes so it stays resident there.
                pl.BlockSpec((None, H_pad, W_pad * C_in), lambda n, t, j: (n, 0, 0)),
                # Resident folded depthwise taps.
                pl.BlockSpec((KH * KW, wc_conv), lambda n, t, j: (0, 0)),
                # Only one (K, TN) slab of the pointwise matrix at a time.
                pl.BlockSpec((wc_conv, TN), lambda n, t, j: (0, j)),
            ],
            out_specs=pl.BlockSpec((None, TH, TN), lambda n, t, j: (n, t, j)),
            scratch_shapes=[pltpu.VMEM((TH, wc_conv), jnp.bfloat16)],
        ),
        compiler_params=pltpu.CompilerParams(
            dimension_semantics=("parallel", "parallel", "arbitrary"),
            vmem_limit_bytes=vmem_limit),
        cost_estimate=pl.CostEstimate(flops=int(flops), transcendentals=0,
                                      bytes_accessed=int(bytes_accessed)),
    )(x_folded, dw_folded, bmat)

    # Free unfold of the lane axis, then NHWC -> NCHW for PyTorch parity.
    out = out_folded.reshape(N, H_out, W_out, C_out)
    return jnp.transpose(out, (0, 3, 1, 2))


def _reference(x_nchw, dw_weight, pw_weight, *, stride, padding, dilation):
    """Pure-JAX f32 reference using lax.conv_general_dilated (NCHW, like PyTorch)."""
    C_in = x_nchw.shape[1]
    y = jax.lax.conv_general_dilated(
        x_nchw, dw_weight,
        window_strides=(stride, stride),
        padding=((padding, padding), (padding, padding)),
        rhs_dilation=(dilation, dilation),
        dimension_numbers=("NCHW", "OIHW", "NCHW"),
        feature_group_count=C_in,
        precision=jax.lax.Precision.HIGHEST)
    y = jax.lax.conv_general_dilated(
        y, pw_weight,
        window_strides=(1, 1),
        padding=((0, 0), (0, 0)),
        dimension_numbers=("NCHW", "OIHW", "NCHW"),
        precision=jax.lax.Precision.HIGHEST)
    return y


if __name__ == "__main__":
    # SeparableConv2d(in_channels=8, out_channels=16, kernel_size=3, bias=False)
    N, C_in, H, W = 2, 8, 16, 16
    C_out, K = 16, 3

    key = jax.random.PRNGKey(0)
    kx, kdw, kpw = jax.random.split(key, 3)
    x = jax.random.normal(kx, (N, C_in, H, W), dtype=jnp.float32)
    dw_weight = jax.random.normal(kdw, (C_in, 1, K, K), dtype=jnp.float32) * 0.1
    pw_weight = jax.random.normal(kpw, (C_out, C_in, 1, 1), dtype=jnp.float32) * 0.1

    configs = [
        dict(stride=1, padding=1, dilation=1, h_tile=8, pw_tile=None),     # 2 H tiles
        dict(stride=1, padding=1, dilation=1, h_tile=None, pw_tile=128),   # 2 B slabs
        dict(stride=1, padding=1, dilation=1, h_tile=None, pw_tile=None),  # single tile
        dict(stride=1, padding=2, dilation=2, h_tile=None, pw_tile=None),  # dilated taps
        dict(stride=2, padding=1, dilation=1, h_tile=None, pw_tile=None),  # strided output
    ]
    for cfg in configs:
        h_tile = cfg.pop("h_tile")
        pw_tile = cfg.pop("pw_tile")
        run = jax.jit(functools.partial(separable_conv2d, h_tile=h_tile,
                                        pw_tile=pw_tile, **cfg))
        out = jax.block_until_ready(run(x, dw_weight, pw_weight))
        ref = _reference(x, dw_weight, pw_weight, **cfg)
        assert out.shape == ref.shape, (cfg, out.shape, ref.shape)
        # bf16 MXU operands with f32 accumulation -> compare against the f32
        # reference at bf16-level tolerance.
        assert jnp.allclose(out, ref, rtol=5e-3, atol=2e-3), (cfg, "mismatch")

    print("KERNEL_OK")
</pallas_src>

<mosaic_0001>
module attributes {stable_mosaic.version = 11 : i64} {
  func.func @kernel(%arg0: i32, %arg1: i32, %arg2: i32, %arg3: memref<1x18x144xf32, #tpu.memory_space<vmem>>, %arg4: memref<9x128xf32, #tpu.memory_space<vmem>>, %arg5: memref<128x256xbf16, #tpu.memory_space<vmem>>, %arg6: memref<1x8x256xf32, #tpu.memory_space<vmem>>, %arg7: memref<8x128xbf16, #tpu.memory_space<vmem>>) attributes {dimension_semantics = [#tpu.dimension_semantics<parallel>, #tpu.dimension_semantics<parallel>, #tpu.dimension_semantics<arbitrary>], iteration_bounds = array<i64: 2, 2, 1>, scalar_prefetch = 0 : i64, scratch_operands = 1 : i64, tpu.core_type = #tpu.core_type<tc>, window_params = [{transform_indices = @transform_0, window_bounds = array<i64: 1, 18, 144>}, {pipeline_mode = #tpu.pipeline_mode<synchronous>, transform_indices = @transform_1, window_bounds = array<i64: 9, 128>}, {transform_indices = @transform_2, window_bounds = array<i64: 128, 256>}, {transform_indices = @transform_3, window_bounds = array<i64: 1, 8, 256>}]} {
    %c0_i32 = arith.constant 0 : i32
    %0 = arith.cmpi eq, %arg2, %c0_i32 : i32
    %1 = arith.extui %0 : i1 to i32
    %c0_i32_0 = arith.constant 0 : i32
    %2 = arith.cmpi ne, %1, %c0_i32_0 : i32
    scf.if %2 {
      %c8_i32 = arith.constant 8 : i32
      %9 = arith.muli %arg1, %c8_i32 : i32
      %10 = tpu.assume_multiple %9, 8 : i32
      %c0_7 = arith.constant 0 : index
      %11 = arith.index_cast %10 : i32 to index
      %c0_8 = arith.constant 0 : index
      %12 = vector.load %arg3[%c0_7, %11, %c0_8] : memref<1x18x144xf32, #tpu.memory_space<vmem>>, vector<1x10x144xf32>
      %13 = vector.shape_cast %12 : vector<1x10x144xf32> to vector<10x144xf32>
      %c0_9 = arith.constant 0 : index
      %c0_10 = arith.constant 0 : index
      %14 = vector.load %arg4[%c0_9, %c0_10] : memref<9x128xf32, #tpu.memory_space<vmem>>, vector<9x128xf32>
      %15 = vector.extract_strided_slice %13 {offsets = [0, 0], sizes = [10, 128], strides = [1, 1]} : vector<10x144xf32> to vector<10x128xf32>
      %16 = vector.extract_strided_slice %13 {offsets = [0, 8], sizes = [10, 128], strides = [1, 1]} : vector<10x144xf32> to vector<10x128xf32>
      %17 = vector.extract_strided_slice %13 {offsets = [0, 16], sizes = [10, 128], strides = [1, 1]} : vector<10x144xf32> to vector<10x128xf32>
      %cst_11 = arith.constant 0.000000e+00 : f32
      %18 = vector.broadcast %cst_11 : f32 to vector<8x128xf32>
      %19 = vector.extract_strided_slice %15 {offsets = [0, 0], sizes = [8, 128], strides = [1, 1]} : vector<10x128xf32> to vector<8x128xf32>
      %20 = vector.extract_strided_slice %14 {offsets = [0, 0], sizes = [1, 128], strides = [1, 1]} : vector<9x128xf32> to vector<1x128xf32>
      %21 = vector.shape_cast %20 : vector<1x128xf32> to vector<128xf32>
      %22 = vector.shape_cast %21 : vector<128xf32> to vector<1x128xf32>
      %23 = vector.broadcast %22 : vector<1x128xf32> to vector<8x128xf32>
      %24 = arith.mulf %19, %23 : vector<8x128xf32>
      %25 = arith.addf %18, %24 : vector<8x128xf32>
      %26 = vector.extract_strided_slice %16 {offsets = [0, 0], sizes = [8, 128], strides = [1, 1]} : vector<10x128xf32> to vector<8x128xf32>
      %27 = vector.extract_strided_slice %14 {offsets = [1, 0], sizes = [1, 128], strides = [1, 1]} : vector<9x128xf32> to vector<1x128xf32>
      %28 = vector.shape_cast %27 : vector<1x128xf32> to vector<128xf32>
      %29 = vector.shape_cast %28 : vector<128xf32> to vector<1x128xf32>
      %30 = vector.broadcast %29 : vector<1x128xf32> to vector<8x128xf32>
      %31 = arith.mulf %26, %30 : vector<8x128xf32>
      %32 = arith.addf %25, %31 : vector<8x128xf32>
      %33 = vector.extract_strided_slice %17 {offsets = [0, 0], sizes = [8, 128], strides = [1, 1]} : vector<10x128xf32> to vector<8x128xf32>
      %34 = vector.extract_strided_slice %14 {offsets = [2, 0], sizes = [1, 128], strides = [1, 1]} : vector<9x128xf32> to vector<1x128xf32>
      %35 = vector.shape_cast %34 : vector<1x128xf32> to vector<128xf32>
      %36 = vector.shape_cast %35 : vector<128xf32> to vector<1x128xf32>
      %37 = vector.broadcast %36 : vector<1x128xf32> to vector<8x128xf32>
      %38 = arith.mulf %33, %37 : vector<8x128xf32>
      %39 = arith.addf %32, %38 : vector<8x128xf32>
      %40 = vector.extract_strided_slice %15 {offsets = [1, 0], sizes = [8, 128], strides = [1, 1]} : vector<10x128xf32> to vector<8x128xf32>
      %41 = vector.extract_strided_slice %14 {offsets = [3, 0], sizes = [1, 128], strides = [1, 1]} : vector<9x128xf32> to vector<1x128xf32>
      %42 = vector.shape_cast %41 : vector<1x128xf32> to vector<128xf32>
      %43 = vector.shape_cast %42 : vector<128xf32> to vector<1x128xf32>
      %44 = vector.broadcast %43 : vector<1x128xf32> to vector<8x128xf32>
      %45 = arith.mulf %40, %44 : vector<8x128xf32>
      %46 = arith.addf %39, %45 : vector<8x128xf32>
      %47 = vector.extract_strided_slice %16 {offsets = [1, 0], sizes = [8, 128], strides = [1, 1]} : vector<10x128xf32> to vector<8x128xf32>
      %48 = vector.extract_strided_slice %14 {offsets = [4, 0], sizes = [1, 128], strides = [1, 1]} : vector<9x128xf32> to vector<1x128xf32>
      %49 = vector.shape_cast %48 : vector<1x128xf32> to vector<128xf32>
      %50 = vector.shape_cast %49 : vector<128xf32> to vector<1x128xf32>
      %51 = vector.broadcast %50 : vector<1x128xf32> to vector<8x128xf32>
      %52 = arith.mulf %47, %51 : vector<8x128xf32>
      %53 = arith.addf %46, %52 : vector<8x128xf32>
      %54 = vector.extract_strided_slice %17 {offsets = [1, 0], sizes = [8, 128], strides = [1, 1]} : vector<10x128xf32> to vector<8x128xf32>
      %55 = vector.extract_strided_slice %14 {offsets = [5, 0], sizes = [1, 128], strides = [1, 1]} : vector<9x128xf32> to vector<1x128xf32>
      %56 = vector.shape_cast %55 : vector<1x128xf32> to vector<128xf32>
      %57 = vector.shape_cast %56 : vector<128xf32> to vector<1x128xf32>
      %58 = vector.broadcast %57 : vector<1x128xf32> to vector<8x128xf32>
      %59 = arith.mulf %54, %58 : vector<8x128xf32>
      %60 = arith.addf %53, %59 : vector<8x128xf32>
      %61 = vector.extract_strided_slice %15 {offsets = [2, 0], sizes = [8, 128], strides = [1, 1]} : vector<10x128xf32> to vector<8x128xf32>
      %62 = vector.extract_strided_slice %14 {offsets = [6, 0], sizes = [1, 128], strides = [1, 1]} : vector<9x128xf32> to vector<1x128xf32>
      %63 = vector.shape_cast %62 : vector<1x128xf32> to vector<128xf32>
      %64 = vector.shape_cast %63 : vector<128xf32> to vector<1x128xf32>
      %65 = vector.broadcast %64 : vector<1x128xf32> to vector<8x128xf32>
      %66 = arith.mulf %61, %65 : vector<8x128xf32>
      %67 = arith.addf %60, %66 : vector<8x128xf32>
      %68 = vector.extract_strided_slice %16 {offsets = [2, 0], sizes = [8, 128], strides = [1, 1]} : vector<10x128xf32> to vector<8x128xf32>
      %69 = vector.extract_strided_slice %14 {offsets = [7, 0], sizes = [1, 128], strides = [1, 1]} : vector<9x128xf32> to vector<1x128xf32>
      %70 = vector.shape_cast %69 : vector<1x128xf32> to vector<128xf32>
      %71 = vector.shape_cast %70 : vector<128xf32> to vector<1x128xf32>
      %72 = vector.broadcast %71 : vector<1x128xf32> to vector<8x128xf32>
      %73 = arith.mulf %68, %72 : vector<8x128xf32>
      %74 = arith.addf %67, %73 : vector<8x128xf32>
      %75 = vector.extract_strided_slice %17 {offsets = [2, 0], sizes = [8, 128], strides = [1, 1]} : vector<10x128xf32> to vector<8x128xf32>
      %76 = vector.extract_strided_slice %14 {offsets = [8, 0], sizes = [1, 128], strides = [1, 1]} : vector<9x128xf32> to vector<1x128xf32>
      %77 = vector.shape_cast %76 : vector<1x128xf32> to vector<128xf32>
      %78 = vector.shape_cast %77 : vector<128xf32> to vector<1x128xf32>
      %79 = vector.broadcast %78 : vector<1x128xf32> to vector<8x128xf32>
      %80 = arith.mulf %75, %79 : vector<8x128xf32>
      %81 = arith.addf %74, %80 : vector<8x128xf32>
      %82 = arith.truncf %81 : vector<8x128xf32> to vector<8x128xbf16>
      %c0_12 = arith.constant 0 : index
      %c0_13 = arith.constant 0 : index
      %83 = vector.load %arg7[%c0_12, %c0_13] : memref<8x128xbf16, #tpu.memory_space<vmem>>, vector<8x128xbf16>
      tpu.vector_store %arg7[%c0_12, %c0_13], %82 {strides = array<i32>} : memref<8x128xbf16, #tpu.memory_space<vmem>>, vector<8x128xbf16>,
    } else {
    }
    %c0 = arith.constant 0 : index
    %c0_1 = arith.constant 0 : index
    %3 = vector.load %arg7[%c0, %c0_1] : memref<8x128xbf16, #tpu.memory_space<vmem>>, vector<8x128xbf16>
    %c0_2 = arith.constant 0 : index
    %c0_3 = arith.constant 0 : index
    %4 = vector.load %arg5[%c0_2, %c0_3] : memref<128x256xbf16, #tpu.memory_space<vmem>>, vector<128x256xbf16>
    %cst = arith.constant dense<0.000000e+00> : vector<8x256xf32>
    %5 = tpu.matmul %3, %4, %cst {dimension_numbers = #tpu.dot_dimension_numbers<[1], [0], [0], [1], [0, 0, 1, 1], [], []>} : vector<8x128xbf16>, vector<128x256xbf16>, vector<8x256xf32> -> vector<8x256xf32>
    %c0_4 = arith.constant 0 : index
    %c0_5 = arith.constant 0 : index
    %c0_6 = arith.constant 0 : index
    %6 = vector.load %arg6[%c0_4, %c0_5, %c0_6] : memref<1x8x256xf32, #tpu.memory_space<vmem>>, vector<1x8x256xf32>
    %7 = vector.shape_cast %6 : vector<1x8x256xf32> to vector<8x256xf32>
    %8 = vector.shape_cast %5 : vector<8x256xf32> to vector<1x8x256xf32>
    tpu.vector_store %arg6[%c0_4, %c0_5, %c0_6], %8 {strides = array<i32>} : memref<1x8x256xf32, #tpu.memory_space<vmem>>, vector<1x8x256xf32>,
    return
  }
  func.func @transform_0(%arg0: i32, %arg1: i32, %arg2: i32) -> (i32, i32, i32) {
    %c0_i32 = arith.constant 0 : i32
    %c0_i32_0 = arith.constant 0 : i32
    %c0_i32_1 = arith.constant 0 : i32
    return %arg0, %c0_i32, %c0_i32_0 : i32, i32, i32
  }
  func.func @transform_1(%arg0: i32, %arg1: i32, %arg2: i32) -> (i32, i32) {
    %c0_i32 = arith.constant 0 : i32
    %c0_i32_0 = arith.constant 0 : i32
    %c0_i32_1 = arith.constant 0 : i32
    return %c0_i32, %c0_i32_0 : i32, i32
  }
  func.func @transform_2(%arg0: i32, %arg1: i32, %arg2: i32) -> (i32, i32) {
    %c0_i32 = arith.constant 0 : i32
    %c0_i32_0 = arith.constant 0 : i32
    return %c0_i32, %arg2 : i32, i32
  }
  func.func @transform_3(%arg0: i32, %arg1: i32, %arg2: i32) -> (i32, i32, i32) {
    %c0_i32 = arith.constant 0 : i32
    return %arg0, %arg1, %arg2 : i32, i32, i32
  }
}

</mosaic_0001>

<llo_original>
// kernel: tile.7
$region0: #{tile.7}
  %s0 = inlined_call_operand.vmem [shape: f32[9,16,1,1,8], index: 0, kind: input, shape index: {}]
  %s1 = inlined_call_operand.vmem [shape: f32[9,128], index: 1, kind: output, shape index: {}]
  %s2 = smov 3
  %v3 = vld [vmem:[%s0] ss:$16 sm:%s2]
  %s4 = smov 12
  %v5 = vld [vmem:[%s0] ss:$16 sm:%s4]
  %vm6 = vcmask 1043458
  %v7 = vsel %vm6, %v5, %v3
  %s8 = smov 48
  %v9 = vld [vmem:[%s0] ss:$16 sm:%s8]
  %vm10 = vcmask 1045508
  %v11 = vsel %vm10, %v9, %v7
  %s12 = smov 192
  %v13 = vld [vmem:[%s0] ss:$16 sm:%s12]
  %vm14 = vcmask 1047558
  %v15 = vsel %vm14, %v13, %v11
  %vm16 = vcmask 64512
  %17 = vst.msk [vmem:[%s1] sm:$0xff] %vm16, %v15
  %s18 = scalar_lea.vmem %s0, 128
  %v19 = vld [vmem:[%s18] sm:$0x1]
  %vm20 = vcmask 64512
  %s21 = scalar_lea.vmem %s1, 8
  %22 = vst.msk [vmem:[%s21] sm:$0x1] %vm20, %v19
  %s23 = scalar_lea.vmem %s0, 15
  %s24 = smov 3
  %v25 = vld [vmem:[%s23] ss:$16 sm:%s24]
  %s26 = scalar_lea.vmem %s0, 15
  %s27 = smov 12
  %v28 = vld [vmem:[%s26] ss:$16 sm:%s27]
  %vm29 = vcmask 1043458
  %v30 = vsel %vm29, %v28, %v25
  %s31 = scalar_lea.vmem %s0, 15
  %s32 = smov 48
  %v33 = vld [vmem:[%s31] ss:$16 sm:%s32]
  %vm34 = vcmask 1045508
  %v35 = vsel %vm34, %v33, %v30
  %s36 = scalar_lea.vmem %s0, 15
  %s37 = smov 192
  %v38 = vld [vmem:[%s36] ss:$16 sm:%s37]
  %vm39 = vcmask 1047558
  %v40 = vsel %vm39, %v38, %v35
  %41 = vrot.lane.b32.xlu0 %v40, 120
  %v42 = vpop.permute.xlu0 %41
  %vm43 = vcmask 1048512
  %44 = vst.msk [vmem:[%s1] sm:$0xff] %vm43, %v42
  %s45 = scalar_lea.vmem %s0, 143
  %v46 = vld [vmem:[%s45] sm:$0x1]
  %47 = vrot.lane.b32.xlu0 %v46, 120
  %v48 = vpop.permute.xlu0 %47
  %vm49 = vcmask 1048512
  %s50 = scalar_lea.vmem %s1, 8
  %51 = vst.msk [vmem:[%s50] sm:$0x1] %vm49, %v48
  %s52 = scalar_lea.vmem %s0, 14
  %s53 = smov 3
  %v54 = vld [vmem:[%s52] ss:$16 sm:%s53]
  %s55 = scalar_lea.vmem %s0, 14
  %s56 = smov 12
  %v57 = vld [vmem:[%s55] ss:$16 sm:%s56]
  %vm58 = vcmask 1043458
  %v59 = vsel %vm58, %v57, %v54
  %s60 = scalar_lea.vmem %s0, 14
  %s61 = smov 48
  %v62 = vld [vmem:[%s60] ss:$16 sm:%s61]
  %vm63 = vcmask 1045508
  %v64 = vsel %vm63, %v62, %v59
  %s65 = scalar_lea.vmem %s0, 14
  %s66 = smov 192
  %v67 = vld [vmem:[%s65] ss:$16 sm:%s66]
  %vm68 = vcmask 1047558
  %v69 = vsel %vm68, %v67, %v64
  %70 = vrot.lane.b32.xlu0 %v69, 112
  %v71 = vpop.permute.xlu0 %70
  %vm72 = vcmask 982912
  %73 = vst.msk [vmem:[%s1] sm:$0xff] %vm72, %v71
  %s74 = scalar_lea.vmem %s0, 142
  %v75 = vld [vmem:[%s74] sm:$0x1]
  %76 = vrot.lane.b32.xlu0 %v75, 112
  %v77 = vpop.permute.xlu0 %76
  %vm78 = vcmask 982912
  %s79 = scalar_lea.vmem %s1, 8
  %80 = vst.msk [vmem:[%s79] sm:$0x1] %vm78, %v77
  %s81 = scalar_lea.vmem %s0, 13
  %s82 = smov 3
  %v83 = vld [vmem:[%s81] ss:$16 sm:%s82]
  %s84 = scalar_lea.vmem %s0, 13
  %s85 = smov 12
  %v86 = vld [vmem:[%s84] ss:$16 sm:%s85]
  %vm87 = vcmask 1043458
  %v88 = vsel %vm87, %v86, %v83
  %s89 = scalar_lea.vmem %s0, 13
  %s90 = smov 48
  %v91 = vld [vmem:[%s89] ss:$16 sm:%s90]
  %vm92 = vcmask 1045508
  %v93 = vsel %vm92, %v91, %v88
  %s94 = scalar_lea.vmem %s0, 13
  %s95 = smov 192
  %v96 = vld [vmem:[%s94] ss:$16 sm:%s95]
  %vm97 = vcmask 1047558
  %v98 = vsel %vm97, %v96, %v93
  %99 = vrot.lane.b32.xlu0 %v98, 104
  %v100 = vpop.permute.xlu0 %99
  %vm101 = vcmask 917312
  %102 = vst.msk [vmem:[%s1] sm:$0xff] %vm101, %v100
  %s103 = scalar_lea.vmem %s0, 141
  %v104 = vld [vmem:[%s103] sm:$0x1]
  %105 = vrot.lane.b32.xlu0 %v104, 104
  %v106 = vpop.permute.xlu0 %105
  %vm107 = vcmask 917312
  %s108 = scalar_lea.vmem %s1, 8
  %109 = vst.msk [vmem:[%s108] sm:$0x1] %vm107, %v106
  %s110 = scalar_lea.vmem %s0, 12
  %s111 = smov 3
  %v112 = vld [vmem:[%s110] ss:$16 sm:%s111]
  %s113 = scalar_lea.vmem %s0, 12
  %s114 = smov 12
  %v115 = vld [vmem:[%s113] ss:$16 sm:%s114]
  %vm116 = vcmask 1043458
  %v117 = vsel %vm116, %v115, %v112
  %s118 = scalar_lea.vmem %s0, 12
  %s119 = smov 48
  %v120 = vld [vmem:[%s118] ss:$16 sm:%s119]
  %vm121 = vcmask 1045508
  %v122 = vsel %vm121, %v120, %v117
  %s123 = scalar_lea.vmem %s0, 12
  %s124 = smov 192
  %v125 = vld [vmem:[%s123] ss:$16 sm:%s124]
  %vm126 = vcmask 1047558
  %v127 = vsel %vm126, %v125, %v122
  %128 = vrot.lane.b32.xlu0 %v127, 96
  %v129 = vpop.permute.xlu0 %128
  %vm130 = vcmask 851712
  %131 = vst.msk [vmem:[%s1] sm:$0xff] %vm130, %v129
  %s132 = scalar_lea.vmem %s0, 140
  %v133 = vld [vmem:[%s132] sm:$0x1]
  %134 = vrot.lane.b32.xlu0 %v133, 96
  %v135 = vpop.permute.xlu0 %134
  %vm136 = vcmask 851712
  %s137 = scalar_lea.vmem %s1, 8
  %138 = vst.msk [vmem:[%s137] sm:$0x1] %vm136, %v135
  %s139 = scalar_lea.vmem %s0, 11
  %s140 = smov 3
  %v141 = vld [vmem:[%s139] ss:$16 sm:%s140]
  %s142 = scalar_lea.vmem %s0, 11
  %s143 = smov 12
  %v144 = vld [vmem:[%s142] ss:$16 sm:%s143]
  %vm145 = vcmask 1043458
  %v146 = vsel %vm145, %v144, %v141
  %s147 = scalar_lea.vmem %s0, 11
  %s148 = smov 48
  %v149 = vld [vmem:[%s147] ss:$16 sm:%s148]
  %vm150 = vcmask 1045508
  %v151 = vsel %vm150, %v149, %v146
  %s152 = scalar_lea.vmem %s0, 11
  %s153 = smov 192
  %v154 = vld [vmem:[%s152] ss:$16 sm:%s153]
  %vm155 = vcmask 1047558
  %v156 = vsel %vm155, %v154, %v151
  %157 = vrot.lane.b32.xlu0 %v156, 88
  %v158 = vpop.permute.xlu0 %157
  %vm159 = vcmask 786112
  %160 = vst.msk [vmem:[%s1] sm:$0xff] %vm159, %v158
  %s161 = scalar_lea.vmem %s0, 139
  %v162 = vld [vmem:[%s161] sm:$0x1]
  %163 = vrot.lane.b32.xlu0 %v162, 88
  %v164 = vpop.permute.xlu0 %163
  %vm165 = vcmask 786112
  %s166 = scalar_lea.vmem %s1, 8
  %167 = vst.msk [vmem:[%s166] sm:$0x1] %vm165, %v164
  %s168 = scalar_lea.vmem %s0, 10
  %s169 = smov 3
  %v170 = vld [vmem:[%s168] ss:$16 sm:%s169]
  %s171 = scalar_lea.vmem %s0, 10
  %s172 = smov 12
  %v173 = vld [vmem:[%s171] ss:$16 sm:%s172]
  %vm174 = vcmask 1043458
  %v175 = vsel %vm174, %v173, %v170
  %s176 = scalar_lea.vmem %s0, 10
  %s177 = smov 48
  %v178 = vld [vmem:[%s176] ss:$16 sm:%s177]
  %vm179 = vcmask 1045508
  %v180 = vsel %vm179, %v178, %v175
  %s181 = scalar_lea.vmem %s0, 10
  %s182 = smov 192
  %v183 = vld [vmem:[%s181] ss:$16 sm:%s182]
  %vm184 = vcmask 1047558
  %v185 = vsel %vm184, %v183, %v180
  %186 = vrot.lane.b32.xlu0 %v185, 80
  %v187 = vpop.permute.xlu0 %186
  %vm188 = vcmask 720512
  %189 = vst.msk [vmem:[%s1] sm:$0xff] %vm188, %v187
  %s190 = scalar_lea.vmem %s0, 138
  %v191 = vld [vmem:[%s190] sm:$0x1]
  %192 = vrot.lane.b32.xlu0 %v191, 80
  %v193 = vpop.permute.xlu0 %192
  %vm194 = vcmask 720512
  %s195 = scalar_lea.vmem %s1, 8
  %196 = vst.msk [vmem:[%s195] sm:$0x1] %vm194, %v193
  %s197 = scalar_lea.vmem %s0, 9
  %s198 = smov 3
  %v199 = vld [vmem:[%s197] ss:$16 sm:%s198]
  %s200 = scalar_lea.vmem %s0, 9
  %s201 = smov 12
  %v202 = vld [vmem:[%s200] ss:$16 sm:%s201]
  %vm203 = vcmask 1043458
  %v204 = vsel %vm203, %v202, %v199
  %s205 = scalar_lea.vmem %s0, 9
  %s206 = smov 48
  %v207 = vld [vmem:[%s205] ss:$16 sm:%s206]
  %vm208 = vcmask 1045508
  %v209 = vsel %vm208, %v207, %v204
  %s210 = scalar_lea.vmem %s0, 9
  %s211 = smov 192
  %v212 = vld [vmem:[%s210] ss:$16 sm:%s211]
  %vm213 = vcmask 1047558
  %v214 = vsel %vm213, %v212, %v209
  %215 = vrot.lane.b32.xlu0 %v214, 72
  %v216 = vpop.permute.xlu0 %215
  %vm217 = vcmask 654912
  %218 = vst.msk [vmem:[%s1] sm:$0xff] %vm217, %v216
  %s219 = scalar_lea.vmem %s0, 137
  %v220 = vld [vmem:[%s219] sm:$0x1]
  %221 = vrot.lane.b32.xlu0 %v220, 72
  %v222 = vpop.permute.xlu0 %221
  %vm223 = vcmask 654912
  %s224 = scalar_lea.vmem %s1, 8
  %225 = vst.msk [vmem:[%s224] sm:$0x1] %vm223, %v222
  %s226 = scalar_lea.vmem %s0, 8
  %s227 = smov 3
  %v228 = vld [vmem:[%s226] ss:$16 sm:%s227]
  %s229 = scalar_lea.vmem %s0, 8
  %s230 = smov 12
  %v231 = vld [vmem:[%s229] ss:$16 sm:%s230]
  %vm232 = vcmask 1043458
  %v233 = vsel %vm232, %v231, %v228
  %s234 = scalar_lea.vmem %s0, 8
  %s235 = smov 48
  %v236 = vld [vmem:[%s234] ss:$16 sm:%s235]
  %vm237 = vcmask 1045508
  %v238 = vsel %vm237, %v236, %v233
  %s239 = scalar_lea.vmem %s0, 8
  %s240 = smov 192
  %v241 = vld [vmem:[%s239] ss:$16 sm:%s240]
  %vm242 = vcmask 1047558
  %v243 = vsel %vm242, %v241, %v238
  %244 = vrot.lane.b32.xlu0 %v243, 64
  %v245 = vpop.permute.xlu0 %244
  %vm246 = vcmask 589312
  %247 = vst.msk [vmem:[%s1] sm:$0xff] %vm246, %v245
  %s248 = scalar_lea.vmem %s0, 136
  %v249 = vld [vmem:[%s248] sm:$0x1]
  %250 = vrot.lane.b32.xlu0 %v249, 64
  %v251 = vpop.permute.xlu0 %250
  %vm252 = vcmask 589312
  %s253 = scalar_lea.vmem %s1, 8
  %254 = vst.msk [vmem:[%s253] sm:$0x1] %vm252, %v251
  %s255 = scalar_lea.vmem %s0, 7
  %s256 = smov 3
  %v257 = vld [vmem:[%s255] ss:$16 sm:%s256]
  %s258 = scalar_lea.vmem %s0, 7
  %s259 = smov 12
  %v260 = vld [vmem:[%s258] ss:$16 sm:%s259]
  %vm261 = vcmask 1043458
  %v262 = vsel %vm261, %v260, %v257
  %s263 = scalar_lea.vmem %s0, 7
  %s264 = smov 48
  %v265 = vld [vmem:[%s263] ss:$16 sm:%s264]
  %vm266 = vcmask 1045508
  %v267 = vsel %vm266, %v265, %v262
  %s268 = scalar_lea.vmem %s0, 7
  %s269 = smov 192
  %v270 = vld [vmem:[%s268] ss:$16 sm:%s269]
  %vm271 = vcmask 1047558
  %v272 = vsel %vm271, %v270, %v267
  %273 = vrot.lane.b32.xlu0 %v272, 56
  %v274 = vpop.permute.xlu0 %273
  %vm275 = vcmask 523712
  %276 = vst.msk [vmem:[%s1] sm:$0xff] %vm275, %v274
  %s277 = scalar_lea.vmem %s0, 135
  %v278 = vld [vmem:[%s277] sm:$0x1]
  %279 = vrot.lane.b32.xlu0 %v278, 56
  %v280 = vpop.permute.xlu0 %279
  %vm281 = vcmask 523712
  %s282 = scalar_lea.vmem %s1, 8
  %283 = vst.msk [vmem:[%s282] sm:$0x1] %vm281, %v280
  %s284 = scalar_lea.vmem %s0, 6
  %s285 = smov 3
  %v286 = vld [vmem:[%s284] ss:$16 sm:%s285]
  %s287 = scalar_lea.vmem %s0, 6
  %s288 = smov 12
  %v289 = vld [vmem:[%s287] ss:$16 sm:%s288]
  %vm290 = vcmask 1043458
  %v291 = vsel %vm290, %v289, %v286
  %s292 = scalar_lea.vmem %s0, 6
  %s293 = smov 48
  %v294 = vld [vmem:[%s292] ss:$16 sm:%s293]
  %vm295 = vcmask 1045508
  %v296 = vsel %vm295, %v294, %v291
  %s297 = scalar_lea.vmem %s0, 6
  %s298 = smov 192
  %v299 = vld [vmem:[%s297] ss:$16 sm:%s298]
  %vm300 = vcmask 1047558
  %v301 = vsel %vm300, %v299, %v296
  %302 = vrot.lane.b32.xlu0 %v301, 48
  %v303 = vpop.permute.xlu0 %302
  %vm304 = vcmask 458112
  %305 = vst.msk [vmem:[%s1] sm:$0xff] %vm304, %v303
  %s306 = scalar_lea.vmem %s0, 134
  %v307 = vld [vmem:[%s306] sm:$0x1]
  %308 = vrot.lane.b32.xlu0 %v307, 48
  %v309 = vpop.permute.xlu0 %308
  %vm310 = vcmask 458112
  %s311 = scalar_lea.vmem %s1, 8
  %312 = vst.msk [vmem:[%s311] sm:$0x1] %vm310, %v309
  %s313 = scalar_lea.vmem %s0, 5
  %s314 = smov 3
  %v315 = vld [vmem:[%s313] ss:$16 sm:%s314]
  %s316 = scalar_lea.vmem %s0, 5
  %s317 = smov 12
  %v318 = vld [vmem:[%s316] ss:$16 sm:%s317]
  %vm319 = vcmask 1043458
  %v320 = vsel %vm319, %v318, %v315
  %s321 = scalar_lea.vmem %s0, 5
  %s322 = smov 48
  %v323 = vld [vmem:[%s321] ss:$16 sm:%s322]
  %vm324 = vcmask 1045508
  %v325 = vsel %vm324, %v323, %v320
  %s326 = scalar_lea.vmem %s0, 5
  %s327 = smov 192
  %v328 = vld [vmem:[%s326] ss:$16 sm:%s327]
  %vm329 = vcmask 1047558
  %v330 = vsel %vm329, %v328, %v325
  %331 = vrot.lane.b32.xlu0 %v330, 40
  %v332 = vpop.permute.xlu0 %331
  %vm333 = vcmask 392512
  %334 = vst.msk [vmem:[%s1] sm:$0xff] %vm333, %v332
  %s335 = scalar_lea.vmem %s0, 133
  %v336 = vld [vmem:[%s335] sm:$0x1]
  %337 = vrot.lane.b32.xlu0 %v336, 40
  %v338 = vpop.permute.xlu0 %337
  %vm339 = vcmask 392512
  %s340 = scalar_lea.vmem %s1, 8
  %341 = vst.msk [vmem:[%s340] sm:$0x1] %vm339, %v338
  %s342 = scalar_lea.vmem %s0, 4
  %s343 = smov 3
  %v344 = vld [vmem:[%s342] ss:$16 sm:%s343]
  %s345 = scalar_lea.vmem %s0, 4
  %s346 = smov 12
  %v347 = vld [vmem:[%s345] ss:$16 sm:%s346]
  %vm348 = vcmask 1043458
  %v349 = vsel %vm348, %v347, %v344
  %s350 = scalar_lea.vmem %s0, 4
  %s351 = smov 48
  %v352 = vld [vmem:[%s350] ss:$16 sm:%s351]
  %vm353 = vcmask 1045508
  %v354 = vsel %vm353, %v352, %v349
  %s355 = scalar_lea.vmem %s0, 4
  %s356 = smov 192
  %v357 = vld [vmem:[%s355] ss:$16 sm:%s356]
  %vm358 = vcmask 1047558
  %v359 = vsel %vm358, %v357, %v354
  %360 = vrot.lane.b32.xlu0 %v359, 32
  %v361 = vpop.permute.xlu0 %360
  %vm362 = vcmask 326912
  %363 = vst.msk [vmem:[%s1] sm:$0xff] %vm362, %v361
  %s364 = scalar_lea.vmem %s0, 132
  %v365 = vld [vmem:[%s364] sm:$0x1]
  %366 = vrot.lane.b32.xlu0 %v365, 32
  %v367 = vpop.permute.xlu0 %366
  %vm368 = vcmask 326912
  %s369 = scalar_lea.vmem %s1, 8
  %370 = vst.msk [vmem:[%s369] sm:$0x1] %vm368, %v367
  %s371 = scalar_lea.vmem %s0, 3
  %s372 = smov 3
  %v373 = vld [vmem:[%s371] ss:$16 sm:%s372]
  %s374 = scalar_lea.vmem %s0, 3
  %s375 = smov 12
  %v376 = vld [vmem:[%s374] ss:$16 sm:%s375]
  %vm377 = vcmask 1043458
  %v378 = vsel %vm377, %v376, %v373
  %s379 = scalar_lea.vmem %s0, 3
  %s380 = smov 48
  %v381 = vld [vmem:[%s379] ss:$16 sm:%s380]
  %vm382 = vcmask 1045508
  %v383 = vsel %vm382, %v381, %v378
  %s384 = scalar_lea.vmem %s0, 3
  %s385 = smov 192
  %v386 = vld [vmem:[%s384] ss:$16 sm:%s385]
  %vm387 = vcmask 1047558
  %v388 = vsel %vm387, %v386, %v383
  %389 = vrot.lane.b32.xlu0 %v388, 24
  %v390 = vpop.permute.xlu0 %389
  %vm391 = vcmask 261312
  %392 = vst.msk [vmem:[%s1] sm:$0xff] %vm391, %v390
  %s393 = scalar_lea.vmem %s0, 131
  %v394 = vld [vmem:[%s393] sm:$0x1]
  %395 = vrot.lane.b32.xlu0 %v394, 24
  %v396 = vpop.permute.xlu0 %395
  %vm397 = vcmask 261312
  %s398 = scalar_lea.vmem %s1, 8
  %399 = vst.msk [vmem:[%s398] sm:$0x1] %vm397, %v396
  %s400 = scalar_lea.vmem %s0, 2
  %s401 = smov 3
  %v402 = vld [vmem:[%s400] ss:$16 sm:%s401]
  %s403 = scalar_lea.vmem %s0, 2
  %s404 = smov 12
  %v405 = vld [vmem:[%s403] ss:$16 sm:%s404]
  %vm406 = vcmask 1043458
  %v407 = vsel %vm406, %v405, %v402
  %s408 = scalar_lea.vmem %s0, 2
  %s409 = smov 48
  %v410 = vld [vmem:[%s408] ss:$16 sm:%s409]
  %vm411 = vcmask 1045508
  %v412 = vsel %vm411, %v410, %v407
  %s413 = scalar_lea.vmem %s0, 2
  %s414 = smov 192
  %v415 = vld [vmem:[%s413] ss:$16 sm:%s414]
  %vm416 = vcmask 1047558
  %v417 = vsel %vm416, %v415, %v412
  %418 = vrot.lane.b32.xlu0 %v417, 16
  %v419 = vpop.permute.xlu0 %418
  %vm420 = vcmask 195712
  %421 = vst.msk [vmem:[%s1] sm:$0xff] %vm420, %v419
  %s422 = scalar_lea.vmem %s0, 130
  %v423 = vld [vmem:[%s422] sm:$0x1]
  %424 = vrot.lane.b32.xlu0 %v423, 16
  %v425 = vpop.permute.xlu0 %424
  %vm426 = vcmask 195712
  %s427 = scalar_lea.vmem %s1, 8
  %428 = vst.msk [vmem:[%s427] sm:$0x1] %vm426, %v425
  %s429 = scalar_lea.vmem %s0, 1
  %s430 = smov 3
  %v431 = vld [vmem:[%s429] ss:$16 sm:%s430]
  %s432 = scalar_lea.vmem %s0, 1
  %s433 = smov 12
  %v434 = vld [vmem:[%s432] ss:$16 sm:%s433]
  %vm435 = vcmask 1043458
  %v436 = vsel %vm435, %v434, %v431
  %s437 = scalar_lea.vmem %s0, 1
  %s438 = smov 48
  %v439 = vld [vmem:[%s437] ss:$16 sm:%s438]
  %vm440 = vcmask 1045508
  %v441 = vsel %vm440, %v439, %v436
  %s442 = scalar_lea.vmem %s0, 1
  %s443 = smov 192
  %v444 = vld [vmem:[%s442] ss:$16 sm:%s443]
  %vm445 = vcmask 1047558
  %v446 = vsel %vm445, %v444, %v441
  %447 = vrot.lane.b32.xlu0 %v446, 8
  %v448 = vpop.permute.xlu0 %447
  %vm449 = vcmask 130112
  %450 = vst.msk [vmem:[%s1] sm:$0xff] %vm449, %v448
  %s451 = scalar_lea.vmem %s0, 129
  %v452 = vld [vmem:[%s451] sm:$0x1]
  %453 = vrot.lane.b32.xlu0 %v452, 8
  %v454 = vpop.permute.xlu0 %453
  %vm455 = vcmask 130112
  %s456 = scalar_lea.vmem %s1, 8
  %457 = vst.msk [vmem:[%s456] sm:$0x1] %vm455, %v454

// kernel: separable_conv2d.1
$region0: #{separable_conv2d.1}
  #allocation0 [shape = 'u32[]', space=smem, size = 0x4, offset = 0x4, fixed_abs, tag = 'smem constant byte address 0x4 - core index']
  #allocation1 [shape = 'u32[72,128]{1,0:T(1,128)}', space=vmem, size = 0x9000, scoped, tag = 'internal scratch']
  #allocation2 [shape = 'bf16[8,128]{1,0:T(8,128)(2,1)}', space=vmem, size = 0x800, scoped, tag = 'scratch operand']
  %s0 = inlined_call_operand.vmem [shape: f32[2,18,144], index: 0, kind: input, shape index: {}]
  %s1 = inlined_call_operand.vmem [shape: f32[9,128], index: 1, kind: input, shape index: {}]
  %s2 = inlined_call_operand.vmem [shape: bf16[128,256], index: 2, kind: input, shape index: {}]
  %s3 = inlined_call_operand.vmem [shape: f32[2,16,256], index: 3, kind: output, shape index: {}]
  %s4 = sld [smem:[#allocation0]]
  $region49: #{separable_conv2d.1} parent=0
    _
  %s6 = ssub.s32 1, %s4
  %s7 = scalar_select 0, %s6, %s4
  loop: start=0, step=1, limit=6
  $region2: #{separable_conv2d.1} parent=0 // loop_pre_header
    _
  $region3: #{separable_conv2d.1} parent=0 // loop_header
    %s9 = sphi 0, %s13
    %p10 = scmp.ge.s32.totalorder %s9, 6
    %s16 = sphi 0, %s35
    %s17 = sphi 0, %s31
    %s18 = sphi 0, %s27
    %s19 = sphi 0, %s16
    %s20 = sphi 0, %s17
    %s21 = sphi 0, %s18
    %s22 = sphi 0, %s19
    %s23 = sphi 0, %s20
    %s24 = sphi 0, %s21
    %s38 = sphi 0, %s40
    %s41 = sphi 0, %s38
    %s42 = sphi 0, %s41
    %s58 = sphi 0, %s42
    %s62 = sphi 0, %s62
    %s64 = sphi 0, %s62
    %s65 = sphi 0, %s64
    %s79 = sphi 0, %s65
    %s85 = sphi 0, %s87
    %s88 = sphi 0, %s85
    %s89 = sphi 0, %s88
    %s105 = sphi 0, %s89
    %s115 = sphi 0, %s117
    %s118 = sphi 0, %s115
    %s119 = sphi 0, %s118
    %s135 = sphi 0, %s119
  $region4: #{separable_conv2d.1} parent=0 // loop_header_branch
    %12 = sbr.rel (%p10) target = $region8
  $region5: #{separable_conv2d.1} parent=0 // loop_body
    %s14 = ssub.s32 %s9, 1
    %s15 = ssub.s32 %s9, 2
    %s25 = sadd.s32 1, %s18
    %p26 = scmp.ge.s32.totalorder %s25, 1
    %s27 = scalar_select %p26, 0, %s25
    %s28 = sadd.s32 1, %s17
    %s29 = scalar_select %p26, %s28, %s17
    %p30 = scmp.ge.s32.totalorder %s29, 2
    %s31 = scalar_select %p30, 0, %s29
    %s32 = sadd.s32 1, %s16
    %s33 = scalar_select %p30, %s32, %s16
    %p34 = scmp.ge.s32.totalorder %s33, 2
    %s35 = scalar_select %p34, 0, %s33
    %s36 = ssub.s32 %s16, %s35
    %p37 = scmp.eq.s32.totalorder %s36, 0
    %s39 = sadd.s32 %s38, 1
    %s40 = scalar_select %p37, %s38, %s39
    %p43 = pneg %p37
    %p44 = scmp.eq.s32.totalorder %s9, 3
    %p45 = por %p43, %p44
    %p46 = scmp.ne.s32.totalorder %s38, %s41
    %p47 = scmp.eq.s32.totalorder %s9, 0
    %p48 = por %p46, %p47
    %p49 = scmp.ne.s32.totalorder %s38, %s41
    %p50 = scmp.eq.s32.totalorder %s14, 3
    %p51 = por %p49, %p50
    %p52 = scmp.ne.s32.totalorder %s41, %s42
    %p53 = scmp.eq.s32.totalorder %s14, 0
    %p54 = por %p52, %p53
    %p55 = scmp.ne.s32.totalorder %s41, %s42
    %p56 = scmp.eq.s32.totalorder %s15, 3
    %p57 = por %p55, %p56
    %p59 = scmp.ne.s32.totalorder %s42, %s58
    %p60 = scmp.eq.s32.totalorder %s15, 0
    %p61 = por %p59, %p60
    %s63 = sadd.s32 %s62, 1
    %p66 = scmp.eq.s32.totalorder %s9, 3
    %p67 = scmp.ne.s32.totalorder %s62, %s64
    %p68 = scmp.eq.s32.totalorder %s9, 0
    %p69 = por %p67, %p68
    %p70 = scmp.ne.s32.totalorder %s62, %s64
    %p71 = scmp.eq.s32.totalorder %s14, 3
    %p72 = por %p70, %p71
    %p73 = scmp.ne.s32.totalorder %s64, %s65
    %p74 = scmp.eq.s32.totalorder %s14, 0
    %p75 = por %p73, %p74
    %p76 = scmp.ne.s32.totalorder %s64, %s65
    %p77 = scmp.eq.s32.totalorder %s15, 3
    %p78 = por %p76, %p77
    %p80 = scmp.ne.s32.totalorder %s65, %s79
    %p81 = scmp.eq.s32.totalorder %s15, 0
    %p82 = por %p80, %p81
    %s83 = ssub.s32 %s18, %s27
    %p84 = scmp.eq.s32.totalorder %s83, 0
    %s86 = sadd.s32 %s85, 1
    %s87 = scalar_select %p84, %s85, %s86
    %p90 = pneg %p84
    %p91 = scmp.eq.s32.totalorder %s9, 3
    %p92 = por %p90, %p91
    %p93 = scmp.ne.s32.totalorder %s85, %s88
    %p94 = scmp.eq.s32.totalorder %s9, 0
    %p95 = por %p93, %p94
    %p96 = scmp.ne.s32.totalorder %s85, %s88
    %p97 = scmp.eq.s32.totalorder %s14, 3
    %p98 = por %p96, %p97
    %p99 = scmp.ne.s32.totalorder %s88, %s89
    %p100 = scmp.eq.s32.totalorder %s14, 0
    %p101 = por %p99, %p100
    %p102 = scmp.ne.s32.totalorder %s88, %s89
    %p103 = scmp.eq.s32.totalorder %s15, 3
    %p104 = por %p102, %p103
    %p106 = scmp.ne.s32.totalorder %s89, %s105
    %p107 = scmp.eq.s32.totalorder %s15, 0
    %p108 = por %p106, %p107
    %s109 = ssub.s32 %s16, %s35
    %s110 = ssub.s32 %s17, %s31
    %s111 = sor.u32 %s109, %s110
    %s112 = ssub.s32 %s18, %s27
    %s113 = sor.u32 %s111, %s112
    %p114 = scmp.eq.s32.totalorder %s113, 0
    %s116 = sadd.s32 %s115, 1
    %s117 = scalar_select %p114, %s115, %s116
    %p120 = pneg %p114
    %p121 = scmp.eq.s32.totalorder %s9, 3
    %p122 = por %p120, %p121
    %p123 = scmp.ne.s32.totalorder %s115, %s118
    %p124 = scmp.eq.s32.totalorder %s9, 0
    %p125 = por %p123, %p124
    %p126 = scmp.ne.s32.totalorder %s115, %s118
    %p127 = scmp.eq.s32.totalorder %s14, 3
    %p128 = por %p126, %p127
    %p129 = scmp.ne.s32.totalorder %s118, %s119
    %p130 = scmp.eq.s32.totalorder %s14, 0
    %p131 = por %p129, %p130
    %p132 = scmp.ne.s32.totalorder %s118, %s119
    %p133 = scmp.eq.s32.totalorder %s15, 3
    %p134 = por %p132, %p133
    %p136 = scmp.ne.s32.totalorder %s119, %s135
    %p137 = scmp.eq.s32.totalorder %s15, 0
    %p138 = por %p136, %p137
    %p139 = scmp.le.s32.totalorder 1, %s9
    %p140 = scmp.lt.s32.totalorder %s9, 5
    %p141 = pnand %p139, %p140
    %p142 = pneg %p141
    // Predicated region
    $region9: #{separable_conv2d.1} parent=5 // pred_check
      _
    $region10: #{separable_conv2d.1} parent=5 // pred_check_branch
      %144 = sbr.rel (%p141) target = $region12
    $region11: #{separable_conv2d.1} parent=5 // pred_region
      %s145 = ssub.s32 %s9, 1
      // Predicated region
      $region13: #{separable_conv2d.1} parent=11 // pred_check
        %p146 = pneg %p75
      $region14: #{separable_conv2d.1} parent=11 // pred_check_branch
        %148 = sbr.rel (%p146) target = $region16
      $region15: #{separable_conv2d.1} parent=11 // pred_region
        _
      $region16: #{separable_conv2d.1} parent=11 // pred_fallthru
        _
      // Predicated region
      $region17: #{separable_conv2d.1} parent=11 // pred_check
        %p149 = pneg %p101
      $region18: #{separable_conv2d.1} parent=11 // pred_check_branch
        %151 = sbr.rel (%p149) target = $region20
      $region19: #{separable_conv2d.1} parent=11 // pred_region
        %s152 = smul.u32 2, %s21
        %p153 = scmp.lt.s32.totalorder %s152, 1
        %s154 = scalar_select %p153, %s152, 1
        %s155 = smul.addr %s154, 4
        %s156 = scalar_lea.vmem %s2, %s155
        %s157 = smul.u32 2, %s21
      $region20: #{separable_conv2d.1} parent=11 // pred_fallthru
        _
    $region12: #{separable_conv2d.1} parent=5 // pred_fallthru
      _
    %p158 = scmp.lt.s32.totalorder %s9, 4
    // Predicated region
    $region21: #{separable_conv2d.1} parent=5 // pred_check
      %p159 = pneg %p158
    $region22: #{separable_conv2d.1} parent=5 // pred_check_branch
      %161 = sbr.rel (%p159) target = $region24
    $region23: #{separable_conv2d.1} parent=5 // pred_region
      // Predicated region
      $region25: #{separable_conv2d.1} parent=23 // pred_check
        %p162 = pneg %p48
      $region26: #{separable_conv2d.1} parent=23 // pred_check_branch
        %164 = sbr.rel (%p162) target = $region28
      $region27: #{separable_conv2d.1} parent=23 // pred_region
        %p165 = scmp.lt.s32.totalorder %s16, 1
        %s166 = scalar_select %p165, %s16, 1
        %s167 = smul.addr %s166, 6
        %s168 = smul.addr %s167, 8
        %s169 = scalar_lea.vmem %s0, %s168
      $region28: #{separable_conv2d.1} parent=23 // pred_fallthru
        _
    $region24: #{separable_conv2d.1} parent=5 // pred_fallthru
      _
    %p170 = scmp.le.s32.totalorder 1, %s9
    %p171 = scmp.lt.s32.totalorder %s9, 5
    %p172 = pnand %p170, %p171
    %p173 = pneg %p172
    // Predicated region
    $region29: #{separable_conv2d.1} parent=5 // pred_check
      _
    $region30: #{separable_conv2d.1} parent=5 // pred_check_branch
      %175 = sbr.rel (%p172) target = $region32
    $region31: #{separable_conv2d.1} parent=5 // pred_region
      %s176 = ssub.s32 %s9, 1
      %p177 = scmp.lt.s32.totalorder %s19, 1
      %s178 = scalar_select %p177, %s19, 1
      %s179 = smul.addr %s178, 6
      %s180 = smul.addr %s179, 8
      %s181 = scalar_lea.vmem %s0, %s180
      %p182 = pneg %p54
      %p183 = pneg %p51
      %p184 = pneg %p75
      %p185 = pneg %p72
      %s186 = smul.u32 2, %s21
      %p187 = scmp.lt.s32.totalorder %s186, 1
      %s188 = scalar_select %p187, %s186, 1
      %s189 = smul.addr %s188, 4
      %s190 = scalar_lea.vmem %s2, %s189
      %p191 = pneg %p101
      %p192 = pneg %p98
      %p193 = pneg %p131
      %p194 = pneg %p128
      %s195 = smul.u32 2, %s21
      %p196 = scmp.lt.s32.totalorder %s19, 1
      %s197 = scalar_select %p196, %s19, 1
      %p198 = scmp.lt.s32.totalorder %s20, 1
      %s199 = scalar_select %p198, %s20, 1
      %p200 = scmp.lt.s32.totalorder %s195, 1
      %s201 = scalar_select %p200, %s195, 1
      %s202 = smul.addr %s199, 2
      %s203 = sadd.s32 %s201, %s202
      %s204 = smul.addr %s197, 4
      %s205 = sadd.s32 %s203, %s204
      %s206 = smul.addr %s205, 8
      %s207 = scalar_lea.vmem %s3, %s206
      %p208 = scmp.lt.s32.totalorder %s19, 1
      %s209 = scalar_select %p208, %s19, 1
      %s210 = smul.addr %s209, 6
      %s211 = smul.addr %s210, 8
      %s212 = scalar_lea.vmem %s0, %s211
      %s213 = smul.u32 2, %s21
      %p214 = scmp.lt.s32.totalorder %s213, 1
      %s215 = scalar_select %p214, %s213, 1
      %s216 = smul.addr %s215, 4
      %s217 = scalar_lea.vmem %s2, %s216
      %s218 = smul.u32 2, %s21
      %s219 = smul.u32 2, %s21
      %p220 = scmp.lt.s32.totalorder %s19, 1
      %s221 = scalar_select %p220, %s19, 1
      %p222 = scmp.lt.s32.totalorder %s20, 1
      %s223 = scalar_select %p222, %s20, 1
      %p224 = scmp.lt.s32.totalorder %s219, 1
      %s225 = scalar_select %p224, %s219, 1
      %s226 = smul.addr %s223, 2
      %s227 = sadd.s32 %s225, %s226
      %s228 = smul.addr %s221, 4
      %s229 = sadd.s32 %s227, %s228
      %s230 = smul.addr %s229, 8
      %s231 = scalar_lea.vmem %s3, %s230
      %s232 = smul.u32 2, %s21
      %p233 = scmp.eq.s32.totalorder %s21, 0
      // Predicated region
      $region33: #{separable_conv2d.1} parent=31 // pred_check
        %p234 = pneg %p233
      $region34: #{separable_conv2d.1} parent=31 // pred_check_branch
        %236 = sbr.rel (%p234) target = $region36
      $region35: #{separable_conv2d.1} parent=31 // pred_region
        %s237 = smul.u32 %s20, 8
        %s238 = sshra.s32 %s237, 3
        %s239 = sand.u32 %s237, 7
        %s240 = smul.u32 %s238, 2
        %s241 = smul.addr %s240, 8
        %s242 = scalar_lea.vmem %s212, %s241
        %v243 = vld [vmem:[%s242] sm:$0xff]
        %v244 = vld [vmem:[%s242 + $0x8] sm:$0xff]
        %v245 = vld [vmem:[%s242 + $0x10] sm:$0x3]
        %v246 = vld [vmem:[%s242 + $0x18] sm:$0x3]
        %v247 = vld [vmem:[%s1] sm:$0xff]
        %v248 = vld [vmem:[%s1 + $0x8] sm:$0x1]
        %v249 = vperm.slane %v247, 0
        %v250 = vmul.f32 %v243, %v249
        %v251 = vadd.f32 %v250, 0.0
        %v252 = vperm.slane %v247, 1
        %254 = vrot.lane.b32.xlu0 %v252, 8
        %v255 = vpop.permute.xlu0 %254
        %v257 = vmul.f32 %v243, %v255
        %v258 = vmul.f32 %v244, %v255
        %261 = vrot.lane.b32.xlu0 %v257, 120
        %v262 = vpop.permute.xlu0 %261
        %263 = vrot.lane.b32.xlu0 %v258, 120
        %v264 = vpop.permute.xlu0 %263
        %vm265 = vcmask 982016
        %v266 = vsel %vm265, %v262, %v264
        %v268 = vadd.f32 %v251, %v266
        %v269 = vperm.slane %v247, 2
        %271 = vrot.lane.b32.xlu0 %v269, 16
        %v272 = vpop.permute.xlu0 %271
        %v274 = vmul.f32 %v243, %v272
        %v275 = vmul.f32 %v244, %v272
        %278 = vrot.lane.b32.xlu0 %v274, 112
        %v279 = vpop.permute.xlu0 %278
        %280 = vrot.lane.b32.xlu0 %v275, 112
        %v281 = vpop.permute.xlu0 %280
        %vm282 = vcmask 916480
        %v283 = vsel %vm282, %v279, %v281
        %v285 = vadd.f32 %v268, %v283
        %v286 = vperm.slane %v247, 3
        %v287 = vmul.f32 %v243, %v286
        %v288 = vmul.f32 %v245, %v286
        %vm291 = vcmask 1046528
        %v292 = vrot.slane %v287, 1
        %v293 = vrot.slane %v288, 1
        %v294 = vsel %vm291, %v292, %v293
        %v296 = vadd.f32 %v285, %v294
        %v297 = vperm.slane %v247, 4
        %299 = vrot.lane.b32.xlu0 %v297, 8
        %v300 = vpop.permute.xlu0 %299
        %v302 = vmul.f32 %v243, %v300
        %v303 = vmul.f32 %v244, %v300
        %v304 = vmul.f32 %v245, %v300
        %v305 = vmul.f32 %v246, %v300
        %v310 = vrot.slane %v302, 1
        %v311 = vrot.slane %v304, 1
        %v312 = vsel %vm291, %v310, %v311
        %v313 = vrot.slane %v303, 1
        %v314 = vrot.slane %v305, 1
        %v315 = vsel %vm291, %v313, %v314
        %316 = vrot.lane.b32.xlu0 %v312, 120
        %v317 = vpop.permute.xlu0 %316
        %318 = vrot.lane.b32.xlu0 %v315, 120
        %v319 = vpop.permute.xlu0 %318
        %v320 = vsel %vm265, %v317, %v319
        %v322 = vadd.f32 %v296, %v320
        %v323 = vperm.slane %v247, 5
        %325 = vrot.lane.b32.xlu0 %v323, 16
        %v326 = vpop.permute.xlu0 %325
        %v328 = vmul.f32 %v243, %v326
        %v329 = vmul.f32 %v244, %v326
        %v330 = vmul.f32 %v245, %v326
        %v331 = vmul.f32 %v246, %v326
        %v336 = vrot.slane %v328, 1
        %v337 = vrot.slane %v330, 1
        %v338 = vsel %vm291, %v336, %v337
        %v339 = vrot.slane %v329, 1
        %v340 = vrot.slane %v331, 1
        %v341 = vsel %vm291, %v339, %v340
        %342 = vrot.lane.b32.xlu0 %v338, 112
        %v343 = vpop.permute.xlu0 %342
        %344 = vrot.lane.b32.xlu0 %v341, 112
        %v345 = vpop.permute.xlu0 %344
        %v346 = vsel %vm282, %v343, %v345
        %v348 = vadd.f32 %v322, %v346
        %v349 = vperm.slane %v247, 6
        %v350 = vmul.f32 %v243, %v349
        %v351 = vmul.f32 %v245, %v349
        %vm354 = vcmask 1045504
        %v355 = vrot.slane %v350, 2
        %v356 = vrot.slane %v351, 2
        %v357 = vsel %vm354, %v355, %v356
        %v359 = vadd.f32 %v348, %v357
        %v360 = vperm.slane %v247, 7
        %362 = vrot.lane.b32.xlu0 %v360, 8
        %v363 = vpop.permute.xlu0 %362
        %v365 = vmul.f32 %v243, %v363
        %v366 = vmul.f32 %v244, %v363
        %v367 = vmul.f32 %v245, %v363
        %v368 = vmul.f32 %v246, %v363
        %v373 = vrot.slane %v365, 2
        %v374 = vrot.slane %v367, 2
        %v375 = vsel %vm354, %v373, %v374
        %v376 = vrot.slane %v366, 2
        %v377 = vrot.slane %v368, 2
        %v378 = vsel %vm354, %v376, %v377
        %379 = vrot.lane.b32.xlu0 %v375, 120
        %v380 = vpop.permute.xlu0 %379
        %381 = vrot.lane.b32.xlu0 %v378, 120
        %v382 = vpop.permute.xlu0 %381
        %v383 = vsel %vm265, %v380, %v382
        %v385 = vadd.f32 %v359, %v383
        %v386 = vperm.slane %v248, 0
        %388 = vrot.lane.b32.xlu0 %v386, 16
        %v389 = vpop.permute.xlu0 %388
        %v391 = vmul.f32 %v243, %v389
        %v392 = vmul.f32 %v244, %v389
        %v393 = vmul.f32 %v245, %v389
        %v394 = vmul.f32 %v246, %v389
        %v399 = vrot.slane %v391, 2
        %v400 = vrot.slane %v393, 2
        %v401 = vsel %vm354, %v399, %v400
        %v402 = vrot.slane %v392, 2
        %v403 = vrot.slane %v394, 2
        %v404 = vsel %vm354, %v402, %v403
        %405 = vrot.lane.b32.xlu0 %v401, 112
        %v406 = vpop.permute.xlu0 %405
        %407 = vrot.lane.b32.xlu0 %v404, 112
        %v408 = vpop.permute.xlu0 %407
        %v409 = vsel %vm282, %v406, %v408
        %v411 = vadd.f32 %v385, %v409
        %v412 = vpack.c.bf16 %v411, %v411
        %413 = vst [vmem:[#allocation2] sm:$0xf] %v412
      $region36: #{separable_conv2d.1} parent=31 // pred_fallthru
        _
      %v414 = vld [vmem:[#allocation2] sm:$0xf]
      %v415 = vld [vmem:[%s217] sm:$0xff]
      %v416 = vld [vmem:[%s217 + $0x8] sm:$0xff]
      %v417 = vld [vmem:[%s217 + $0x10] sm:$0xff]
      %v418 = vld [vmem:[%s217 + $0x18] sm:$0xff]
      %v419 = vld [vmem:[%s217 + $0x20] sm:$0xff]
      %v420 = vld [vmem:[%s217 + $0x28] sm:$0xff]
      %v421 = vld [vmem:[%s217 + $0x30] sm:$0xff]
      %v422 = vld [vmem:[%s217 + $0x38] sm:$0xff]
      %v423 = vld [vmem:[%s217 + $0x40] sm:$0xff]
      %v424 = vld [vmem:[%s217 + $0x48] sm:$0xff]
      %v425 = vld [vmem:[%s217 + $0x50] sm:$0xff]
      %v426 = vld [vmem:[%s217 + $0x58] sm:$0xff]
      %v427 = vld [vmem:[%s217 + $0x60] sm:$0xff]
      %v428 = vld [vmem:[%s217 + $0x68] sm:$0xff]
      %v429 = vld [vmem:[%s217 + $0x70] sm:$0xff]
      %v430 = vld [vmem:[%s217 + $0x78] sm:$0xff]
      %v447 = vunpack.c.l.b16 %v415
      %v448 = vunpack.c.h.b16 %v415
      %v449 = vunpack.c.l.b16 %v416
      %v450 = vunpack.c.h.b16 %v416
      %v451 = vunpack.c.l.b16 %v417
      %v452 = vunpack.c.h.b16 %v417
      %v453 = vunpack.c.l.b16 %v418
      %v454 = vunpack.c.h.b16 %v418
      %v455 = vunpack.c.l.b16 %v419
      %v456 = vunpack.c.h.b16 %v419
      %v457 = vunpack.c.l.b16 %v420
      %v458 = vunpack.c.h.b16 %v420
      %v459 = vunpack.c.l.b16 %v421
      %v460 = vunpack.c.h.b16 %v421
      %v461 = vunpack.c.l.b16 %v422
      %v462 = vunpack.c.h.b16 %v422
      %v463 = vunpack.c.l.b16 %v423
      %v464 = vunpack.c.h.b16 %v423
      %v465 = vunpack.c.l.b16 %v424
      %v466 = vunpack.c.h.b16 %v424
      %v467 = vunpack.c.l.b16 %v425
      %v468 = vunpack.c.h.b16 %v425
      %v469 = vunpack.c.l.b16 %v426
      %v470 = vunpack.c.h.b16 %v426
      %v471 = vunpack.c.l.b16 %v427
      %v472 = vunpack.c.h.b16 %v427
      %v473 = vunpack.c.l.b16 %v428
      %v474 = vunpack.c.h.b16 %v428
      %v475 = vunpack.c.l.b16 %v429
      %v476 = vunpack.c.h.b16 %v429
      %v477 = vunpack.c.l.b16 %v430
      %v478 = vunpack.c.h.b16 %v430
      %v479 = vpack.c.b16 %v449, %v447
      %v480 = vpack.c.b16 %v450, %v448
      %v481 = vpack.c.b16 %v453, %v451
      %v482 = vpack.c.b16 %v454, %v452
      %v483 = vpack.c.b16 %v457, %v455
      %v484 = vpack.c.b16 %v458, %v456
      %v485 = vpack.c.b16 %v461, %v459
      %v486 = vpack.c.b16 %v462, %v460
      %v487 = vpack.c.b16 %v465, %v463
      %v488 = vpack.c.b16 %v466, %v464
      %v489 = vpack.c.b16 %v469, %v467
      %v490 = vpack.c.b16 %v470, %v468
      %v491 = vpack.c.b16 %v473, %v471
      %v492 = vpack.c.b16 %v474, %v472
      %v493 = vpack.c.b16 %v477, %v475
      %v494 = vpack.c.b16 %v478, %v476
      %511 = vmatpush.bf16.msra.mxu0 %v493
      %512 = vmatpush.bf16.msra.mxu0 %v491
      %513 = vmatpush.bf16.msra.mxu0 %v489
      %514 = vmatpush.bf16.msra.mxu0 %v487
      %515 = vmatpush.bf16.msra.mxu0 %v485
      %516 = vmatpush.bf16.msra.mxu0 %v483
      %517 = vmatpush.bf16.msra.mxu0 %v481
      %518 = vmatpush.bf16.msra.mxu0 %v479
      %519 = vmatmul.bf16.gmra.mxu0 %v414
      %v520 = vpop.f32.mrf.mxu0
      %v521 = vadd.f32 0.0, %v520
      %v522 = vpop.f32.mrf.mxu0
      %523 = vdwg.mxu0
      %524 = vmatpush.bf16.msra.mxu0 %v494
      %525 = vmatpush.bf16.msra.mxu0 %v492
      %526 = vmatpush.bf16.msra.mxu0 %v490
      %527 = vmatpush.bf16.msra.mxu0 %v488
      %528 = vmatpush.bf16.msra.mxu0 %v486
      %529 = vmatpush.bf16.msra.mxu0 %v484
      %530 = vmatpush.bf16.msra.mxu0 %v482
      %531 = vmatpush.bf16.msra.mxu0 %v480
      %532 = vmatmul.bf16.gmra.mxu0 %v414
      %v533 = vpop.f32.mrf.mxu0
      %v534 = vadd.f32 0.0, %v533
      %v535 = vpop.f32.mrf.mxu0
      %536 = vdwg.mxu0
      %537 = vst [vmem:[%s231] sm:$0xff] %v521
      %538 = vst [vmem:[%s231 + $0x8] sm:$0xff] %v534
      %s539 = smul.u32 2, %s21
      %p540 = scmp.lt.s32.totalorder %s19, 1
      %s541 = scalar_select %p540, %s19, 1
      %p542 = scmp.lt.s32.totalorder %s20, 1
      %s543 = scalar_select %p542, %s20, 1
      %p544 = scmp.lt.s32.totalorder %s539, 1
      %s545 = scalar_select %p544, %s539, 1
      %s546 = smul.addr %s543, 2
      %s547 = sadd.s32 %s545, %s546
      %s548 = smul.addr %s541, 4
      %s549 = sadd.s32 %s547, %s548
      %s550 = smul.addr %s549, 8
      %s551 = scalar_lea.vmem %s3, %s550
      // Predicated region
      $region37: #{separable_conv2d.1} parent=31 // pred_check
        %p552 = pneg %p128
      $region38: #{separable_conv2d.1} parent=31 // pred_check_branch
        %554 = sbr.rel (%p552) target = $region40
      $region39: #{separable_conv2d.1} parent=31 // pred_region
        %s555 = smul.u32 2, %s21
      $region40: #{separable_conv2d.1} parent=31 // pred_fallthru
        _
    $region32: #{separable_conv2d.1} parent=5 // pred_fallthru
      _
    %p556 = scmp.le.s32.totalorder 2, %s9
    // Predicated region
    $region41: #{separable_conv2d.1} parent=5 // pred_check
      %p557 = pneg %p556
    $region42: #{separable_conv2d.1} parent=5 // pred_check_branch
      %559 = sbr.rel (%p557) target = $region44
    $region43: #{separable_conv2d.1} parent=5 // pred_region
      %s560 = ssub.s32 %s9, 2
      // Predicated region
      $region45: #{separable_conv2d.1} parent=43 // pred_check
        %p561 = pneg %p134
      $region46: #{separable_conv2d.1} parent=43 // pred_check_branch
        %563 = sbr.rel (%p561) target = $region48
      $region47: #{separable_conv2d.1} parent=43 // pred_region
        %s564 = smul.u32 2, %s24
        %p565 = scmp.lt.s32.totalorder %s22, 1
        %s566 = scalar_select %p565, %s22, 1
        %p567 = scmp.lt.s32.totalorder %s23, 1
        %s568 = scalar_select %p567, %s23, 1
        %p569 = scmp.lt.s32.totalorder %s564, 1
        %s570 = scalar_select %p569, %s564, 1
        %s571 = smul.addr %s568, 2
        %s572 = sadd.s32 %s570, %s571
        %s573 = smul.addr %s566, 4
        %s574 = sadd.s32 %s572, %s573
        %s575 = smul.addr %s574, 8
        %s576 = scalar_lea.vmem %s3, %s575
      $region48: #{separable_conv2d.1} parent=43 // pred_fallthru
        _
    $region44: #{separable_conv2d.1} parent=5 // pred_fallthru
      _
  $region6: #{separable_conv2d.1} parent=0 // loop_footer
    %s13 = sadd.s32 1, %s9
  $region7: #{separable_conv2d.1} parent=0 // loop_footer_branch
    %8 = sbr.rel target = $region3
  $region8: #{separable_conv2d.1} parent=0 // loop_exit
    _

</llo_original>
